<compile_context>
chip_gen: v7x
topology: tpu7x:2x2x1
jax: 0.10.0
libtpu: 0.0.40
codegen_flags: <defaults>
</compile_context>

<pallas_src>
import jax
import jax.numpy as jnp
from jax.experimental import pallas as pl
from jax.experimental.pallas import tpu as pltpu

_LANE = 128


def _round_up(n, m):
    return ((n + m - 1) // m) * m


def _mlp_kernel(x_ref, w1_ref, b1_ref, w2_ref, b2_ref, o_ref):
    # fc1 on the MXU with f32 accumulation; bias + relu on the VPU.
    h = jnp.dot(x_ref[...], w1_ref[...],
                preferred_element_type=jnp.float32)                # [TB, H] f32
    h = jnp.maximum(h + b1_ref[...], 0.0)

    # fc2: contract H of w2[1, H] against H of h[TB, H] -> lane-dense [1, TB]
    # (batch on lanes) instead of a [TB, 1] column of 1/128-occupancy masked stores.
    z = jax.lax.dot_general(
        w2_ref[...], h,
        dimension_numbers=(((1,), (1,)), ((), ())),
        preferred_element_type=jnp.float32)                        # [1, TB]
    z = z + b2_ref[0, 0]                                           # scalar bias (SMEM)
    o_ref[...] = jax.nn.sigmoid(z).astype(o_ref.dtype)


def _vmem_capacity_bytes():
    try:
        info = pltpu.get_tpu_info()
        cap = getattr(info, "vmem_capacity_bytes", None)
        if cap:
            return int(cap)
    except Exception:
        pass
    return 64 * 1024 * 1024  # v7x per-TC VMEM -- smallest across generations.


def net_forward(x, w1, b1, w2, b2, *, tile_b=None, stream_x_bf16=False):
    """x: [B, D], w1: [D, H], b1: [1, H], w2: [1, H], b2: [1, 1] -> [B, 1] f32."""
    B, D = x.shape
    H = w1.shape[1]

    if stream_x_bf16:
        # Halve the streamed x bytes; accumulation stays f32 in the kernel.
        x = x.astype(jnp.bfloat16)
        w1 = w1.astype(jnp.bfloat16)
    x_itemsize = jnp.dtype(x.dtype).itemsize

    # ---- lane-padding- and generation-aware VMEM budget -> batch tile size ----
    vmem_cap = _vmem_capacity_bytes()
    # ~1/3 of per-core VMEM, clamped to [8, 40] MiB (safe on v5e/v6e/v7x).
    budget = min(40 * 1024 * 1024, max(8 * 1024 * 1024, vmem_cap // 3))
    bytes_per_row = (
        2 * x_itemsize * _round_up(D, _LANE)   # x tile, double-buffered, lane-padded
        + 2 * 4 * _round_up(H, _LANE)          # f32 fc1/relu intermediates, lane-padded
        + 2 * 8 * 4                            # [1, tb] output (8 sublanes), 2 buffers
    )
    fixed = 256 * 1024                         # resident weights/biases + slack
    tb_budget = max(_LANE, ((budget - fixed) // bytes_per_row) // _LANE * _LANE)

    tb = min(tb_budget, _round_up(B, _LANE))   # never bigger than the (padded) batch
    if tile_b is not None:
        tb = min(tb, max(_LANE, _round_up(tile_b, _LANE)))
    # Keep >= ~4 grid steps for large batches so the "parallel" axis can be sharded
    # across both v7x TensorCores (and per-step DMAs stay overlapped).
    target_steps = 4
    if B > target_steps * _LANE:
        tb = min(tb, max(_LANE, _round_up(pl.cdiv(B, target_steps), _LANE)))

    B_pad = _round_up(B, tb)
    if B_pad != B:
        # Zero-pad the batch; padded rows give finite outputs sliced off below.
        x = jnp.pad(x, ((0, B_pad - B), (0, 0)))
    grid = (B_pad // tb,)

    # Explicit scoped-VMEM limit sized to the real footprint (default scoped limit
    # is 16 MiB on v5e / 32 MiB on v6e+v7x, which large tiles would overflow).
    est_bytes = fixed + bytes_per_row * tb + (2 << 20)
    vmem_limit = int(min(vmem_cap, max(est_bytes, 16 * 1024 * 1024)))

    cost = pl.CostEstimate(
        flops=2 * B_pad * D * H + 2 * B_pad * H + 4 * B_pad * H,
        transcendentals=B_pad,
        bytes_accessed=(x_itemsize * B_pad * D + x_itemsize * D * H
                        + 4 * (2 * H + 1) + 4 * B_pad),
    )

    out = pl.pallas_call(
        _mlp_kernel,
        out_shape=jax.ShapeDtypeStruct((1, B_pad), jnp.float32),
        grid=grid,
        in_specs=[
            pl.BlockSpec((tb, D), lambda i: (i, 0)),            # x: streamed batch tiles
            pl.BlockSpec((D, H), lambda i: (0, 0)),             # w1: VMEM-resident
            pl.BlockSpec((1, H), lambda i: (0, 0)),             # b1: VMEM-resident
            pl.BlockSpec((1, H), lambda i: (0, 0)),             # w2: VMEM-resident
            pl.BlockSpec(memory_space=pltpu.MemorySpace.SMEM),  # b2: scalar in SMEM
        ],
        out_specs=pl.BlockSpec((1, tb), lambda i: (0, i)),      # lane-dense output row
        compiler_params=pltpu.CompilerParams(
            dimension_semantics=("parallel",),                  # batch tiles independent
            vmem_limit_bytes=vmem_limit,
        ),
        cost_estimate=cost,
    )(x, w1, b1, w2, b2)

    # lane-dense [1, B_pad] -> [B, 1]: pure layout plumbing in the wrapper.
    return out.reshape(-1)[:B].reshape(B, 1)


def net_reference(x, w1, b1, w2, b2):
    h = jnp.maximum(x @ w1 + b1, 0.0)
    return jax.nn.sigmoid(h @ w2.T + b2)


def init_params(key, input_dim, hidden_dim):
    """Deterministic init mimicking nn.Linear's U(-1/sqrt(fan_in), 1/sqrt(fan_in))."""
    k1, k2, k3, k4 = jax.random.split(key, 4)
    bound1 = 1.0 / jnp.sqrt(input_dim)
    bound2 = 1.0 / jnp.sqrt(hidden_dim)
    # w1 stored as [in, out] (transpose of torch's [out, in]) so kernel does x @ w1;
    # w2 stored as [1, H] which IS torch's fc2.weight layout.
    w1 = jax.random.uniform(k1, (input_dim, hidden_dim), jnp.float32, -bound1, bound1)
    b1 = jax.random.uniform(k2, (1, hidden_dim), jnp.float32, -bound1, bound1)
    w2 = jax.random.uniform(k3, (1, hidden_dim), jnp.float32, -bound2, bound2)
    b2 = jax.random.uniform(k4, (1, 1), jnp.float32, -bound2, bound2)
    return w1, b1, w2, b2


if __name__ == "__main__":
    key = jax.random.PRNGKey(0)
    input_dim, hidden_dim = 16, 32
    kx, kx2, kx3, kp = jax.random.split(key, 4)
    w1, b1, w2, b2 = init_params(kp, input_dim, hidden_dim)

    # 1) Tiny batch: single-tile path (tile rounded to 128 for lane-dense store).
    x = jax.random.normal(kx, (8, input_dim), jnp.float32)
    out = jax.block_until_ready(net_forward(x, w1, b1, w2, b2))
    ref = net_reference(x, w1, b1, w2, b2)
    assert out.shape == (8, 1)
    assert jnp.allclose(out, ref, atol=1e-5, rtol=1e-5)

    # 2) Non-multiple-of-tile batch with an explicit small tile: multi-step grid.
    x2 = jax.random.normal(kx2, (300, input_dim), jnp.float32)
    out2 = jax.block_until_ready(net_forward(x2, w1, b1, w2, b2, tile_b=128))
    ref2 = net_reference(x2, w1, b1, w2, b2)
    assert out2.shape == (300, 1)
    assert jnp.allclose(out2, ref2, atol=1e-5, rtol=1e-5)

    # 3) Larger batch, auto tiling (>= 4 grid steps, megacore-shardable on v7x).
    x3 = jax.random.normal(kx3, (2048, input_dim), jnp.float32)
    out3 = jax.block_until_ready(net_forward(x3, w1, b1, w2, b2))
    ref3 = net_reference(x3, w1, b1, w2, b2)
    assert out3.shape == (2048, 1)
    assert jnp.allclose(out3, ref3, atol=1e-5, rtol=1e-5)

    # 3b) Same batch with bf16 x streaming (HBM roofline option, looser tolerance).
    out3b = jax.block_until_ready(net_forward(x3, w1, b1, w2, b2, stream_x_bf16=True))
    assert out3b.shape == (2048, 1)
    assert jnp.allclose(out3b, ref3, atol=2e-2, rtol=2e-2)

    print("KERNEL_OK")
</pallas_src>

<mosaic_0001>
module attributes {stable_mosaic.version = 11 : i64} {
  func.func @_mlp_kernel(%arg0: i32, %arg1: memref<128x16xf32, #tpu.memory_space<vmem>>, %arg2: memref<16x32xf32, #tpu.memory_space<vmem>>, %arg3: memref<1x32xf32, #tpu.memory_space<vmem>>, %arg4: memref<1x32xf32, #tpu.memory_space<vmem>>, %arg5: memref<1x1xf32, #tpu.memory_space<smem>>, %arg6: memref<1x128xf32, #tpu.memory_space<vmem>>) attributes {dimension_semantics = [#tpu.dimension_semantics<parallel>], iteration_bounds = array<i64: 1>, scalar_prefetch = 0 : i64, scratch_operands = 0 : i64, tpu.core_type = #tpu.core_type<tc>, window_params = [{transform_indices = @transform_0, window_bounds = array<i64: 128, 16>}, {pipeline_mode = #tpu.pipeline_mode<synchronous>, transform_indices = @transform_1, window_bounds = array<i64: 16, 32>}, {pipeline_mode = #tpu.pipeline_mode<synchronous>, transform_indices = @transform_2, window_bounds = array<i64: 1, 32>}, {pipeline_mode = #tpu.pipeline_mode<synchronous>, transform_indices = @transform_3, window_bounds = array<i64: 1, 32>}, {transform_indices = @transform_4, window_bounds = array<i64: 1, 1>}, {transform_indices = @transform_5, window_bounds = array<i64: 1, 128>}]} {
    %c0 = arith.constant 0 : index
    %c0_0 = arith.constant 0 : index
    %0 = vector.load %arg1[%c0, %c0_0] : memref<128x16xf32, #tpu.memory_space<vmem>>, vector<128x16xf32>
    %c0_1 = arith.constant 0 : index
    %c0_2 = arith.constant 0 : index
    %1 = vector.load %arg2[%c0_1, %c0_2] : memref<16x32xf32, #tpu.memory_space<vmem>>, vector<16x32xf32>
    %cst = arith.constant dense<0.000000e+00> : vector<128x32xf32>
    %2 = tpu.matmul %0, %1, %cst {dimension_numbers = #tpu.dot_dimension_numbers<[1], [0], [0], [1], [0, 0, 1, 1], [], []>} : vector<128x16xf32>, vector<16x32xf32>, vector<128x32xf32> -> vector<128x32xf32>
    %c0_3 = arith.constant 0 : index
    %c0_4 = arith.constant 0 : index
    %3 = vector.load %arg3[%c0_3, %c0_4] : memref<1x32xf32, #tpu.memory_space<vmem>>, vector<1x32xf32>
    %4 = vector.broadcast %3 : vector<1x32xf32> to vector<128x32xf32>
    %5 = arith.addf %2, %4 : vector<128x32xf32>
    %cst_5 = arith.constant 0.000000e+00 : f32
    %6 = vector.broadcast %cst_5 : f32 to vector<128x32xf32>
    %7 = arith.maximumf %5, %6 : vector<128x32xf32>
    %c0_6 = arith.constant 0 : index
    %c0_7 = arith.constant 0 : index
    %8 = vector.load %arg4[%c0_6, %c0_7] : memref<1x32xf32, #tpu.memory_space<vmem>>, vector<1x32xf32>
    %cst_8 = arith.constant dense<0.000000e+00> : vector<1x128xf32>
    %9 = tpu.matmul %8, %7, %cst_8 {dimension_numbers = #tpu.dot_dimension_numbers<[1], [1], [0], [0], [0, 0, 1, 0], [], []>} : vector<1x32xf32>, vector<128x32xf32>, vector<1x128xf32> -> vector<1x128xf32>
    %c0_9 = arith.constant 0 : index
    %c0_10 = arith.constant 0 : index
    %10 = memref.load %arg5[%c0_9, %c0_10] : memref<1x1xf32, #tpu.memory_space<smem>>
    %11 = vector.broadcast %10 : f32 to vector<1x128xf32>
    %12 = arith.addf %9, %11 : vector<1x128xf32>
    %13 = arith.negf %12 : vector<1x128xf32>
    %14 = math.exp %13 : vector<1x128xf32>
    %cst_11 = arith.constant 1.000000e+00 : f32
    %15 = vector.broadcast %cst_11 : f32 to vector<1x128xf32>
    %16 = arith.addf %15, %14 : vector<1x128xf32>
    %17 = arith.divf %15, %16 : vector<1x128xf32>
    %c0_12 = arith.constant 0 : index
    %c0_13 = arith.constant 0 : index
    %18 = vector.load %arg6[%c0_12, %c0_13] : memref<1x128xf32, #tpu.memory_space<vmem>>, vector<1x128xf32>
    tpu.vector_store %arg6[%c0_12, %c0_13], %17 {strides = array<i32>} : memref<1x128xf32, #tpu.memory_space<vmem>>, vector<1x128xf32>,
    return
  }
  func.func @transform_0(%arg0: i32) -> (i32, i32) {
    %c0_i32 = arith.constant 0 : i32
    %c0_i32_0 = arith.constant 0 : i32
    return %arg0, %c0_i32 : i32, i32
  }
  func.func @transform_1(%arg0: i32) -> (i32, i32) {
    %c0_i32 = arith.constant 0 : i32
    %c0_i32_0 = arith.constant 0 : i32
    %c0_i32_1 = arith.constant 0 : i32
    return %c0_i32, %c0_i32_0 : i32, i32
  }
  func.func @transform_2(%arg0: i32) -> (i32, i32) {
    %c0_i32 = arith.constant 0 : i32
    %c0_i32_0 = arith.constant 0 : i32
    %c0_i32_1 = arith.constant 0 : i32
    return %c0_i32, %c0_i32_0 : i32, i32
  }
  func.func @transform_3(%arg0: i32) -> (i32, i32) {
    %c0_i32 = arith.constant 0 : i32
    %c0_i32_0 = arith.constant 0 : i32
    %c0_i32_1 = arith.constant 0 : i32
    return %c0_i32, %c0_i32_0 : i32, i32
  }
  func.func @transform_4(%arg0: i32) -> (i32, i32) {
    %c0_i32 = arith.constant 0 : i32
    %c0_i32_0 = arith.constant 0 : i32
    %c0_i32_1 = arith.constant 0 : i32
    return %c0_i32, %c0_i32_0 : i32, i32
  }
  func.func @transform_5(%arg0: i32) -> (i32, i32) {
    %c0_i32 = arith.constant 0 : i32
    %c0_i32_0 = arith.constant 0 : i32
    return %c0_i32, %arg0 : i32, i32
  }
}

</mosaic_0001>

<llo_original>
// kernel: tpu_custom_call.1
$region0: #{tpu_custom_call.1}
  #allocation0 [shape = 'u32[]', space=smem, size = 0x4, offset = 0x4, fixed_abs, tag = 'smem constant byte address 0x4 - core index']
  #allocation1 [shape = 'u32[144,128]{1,0:T(1,128)}', space=vmem, size = 0x12000, scoped, tag = 'internal scratch']
  #allocation2 [shape = 'f32[1,1]{1,0:T(1,128)S(6)}', space=smem, size = 0x200, scoped, tag = 'scoped memory for tpu_custom_call.1']
  %s0 = inlined_call_operand.vmem [shape: f32[128,16], index: 0, kind: input, shape index: {}]
  %s1 = inlined_call_operand.vmem [shape: f32[16,32], index: 1, kind: input, shape index: {}]
  %s2 = inlined_call_operand.vmem [shape: f32[1,32], index: 2, kind: input, shape index: {}]
  %s3 = inlined_call_operand.vmem [shape: f32[1,32], index: 3, kind: input, shape index: {}]
  %s4 = inlined_call_operand.<no memory space> [shape: f32[1,1], index: 4, kind: input, shape index: {}]
  %s5 = inlined_call_operand.hbm [shape: f32[1,128], index: 5, kind: output, shape index: {}]
  %s6 = sld [smem:[#allocation0]]
  $region30: #{tpu_custom_call.1} parent=0
    _
  %s8 = ssub.s32 1, %s6
  %s9 = scalar_select 0, %s8, %s6
  %10 = sst [smem:[#allocation2]] %s4
  $region1: #{tpu_custom_call.1} parent=0
    #allocation3 [shape = 'u8[512]{0}', space=vmem, size = 0x400, scoped, tag = 'output window, operand 0, single buffered']
    #allocation4 [shape = 's32[1]{0}', space=sflag, size = 0x4, scoped, tag = 'scoped memory for tpu_custom_call.1']
    %11 = vsyncpa [#allocation4], 0
    // Predicated region
    $region2: #{tpu_custom_call.1} parent=1 // pred_check
      _
    $region3: #{tpu_custom_call.1} parent=1 // pred_check_branch
      %13 = sbr.rel (0) target = $region5
    $region4: #{tpu_custom_call.1} parent=1 // pred_region
      _
    $region5: #{tpu_custom_call.1} parent=1 // pred_fallthru
      _
    // Predicated region
    $region6: #{tpu_custom_call.1} parent=1 // pred_check
      _
    $region7: #{tpu_custom_call.1} parent=1 // pred_check_branch
      %15 = sbr.rel (0) target = $region9
    $region8: #{tpu_custom_call.1} parent=1 // pred_region
      _
    $region9: #{tpu_custom_call.1} parent=1 // pred_fallthru
      _
    // Predicated region
    $region10: #{tpu_custom_call.1} parent=1 // pred_check
      _
    $region11: #{tpu_custom_call.1} parent=1 // pred_check_branch
      %17 = sbr.rel (0) target = $region13
    $region12: #{tpu_custom_call.1} parent=1 // pred_region
      _
    $region13: #{tpu_custom_call.1} parent=1 // pred_fallthru
      _
    // Predicated region
    $region14: #{tpu_custom_call.1} parent=1 // pred_check
      _
    $region15: #{tpu_custom_call.1} parent=1 // pred_check_branch
      %19 = sbr.rel (0) target = $region17
    $region16: #{tpu_custom_call.1} parent=1 // pred_region
      _
    $region17: #{tpu_custom_call.1} parent=1 // pred_fallthru
      _
    // Predicated region
    $region18: #{tpu_custom_call.1} parent=1 // pred_check
      _
    $region19: #{tpu_custom_call.1} parent=1 // pred_check_branch
      %21 = sbr.rel (0) target = $region21
    $region20: #{tpu_custom_call.1} parent=1 // pred_region
      _
    $region21: #{tpu_custom_call.1} parent=1 // pred_fallthru
      _
    %v22 = vld [vmem:[%s0] sm:$0xff]
    %v23 = vld [vmem:[%s0 + $0x8] sm:$0xff]
    %v24 = vld [vmem:[%s0 + $0x10] sm:$0xff]
    %v25 = vld [vmem:[%s0 + $0x18] sm:$0xff]
    %v26 = vld [vmem:[%s0 + $0x20] sm:$0xff]
    %v27 = vld [vmem:[%s0 + $0x28] sm:$0xff]
    %v28 = vld [vmem:[%s0 + $0x30] sm:$0xff]
    %v29 = vld [vmem:[%s0 + $0x38] sm:$0xff]
    %v30 = vld [vmem:[%s0 + $0x40] sm:$0xff]
    %v31 = vld [vmem:[%s0 + $0x48] sm:$0xff]
    %v32 = vld [vmem:[%s0 + $0x50] sm:$0xff]
    %v33 = vld [vmem:[%s0 + $0x58] sm:$0xff]
    %v34 = vld [vmem:[%s0 + $0x60] sm:$0xff]
    %v35 = vld [vmem:[%s0 + $0x68] sm:$0xff]
    %v36 = vld [vmem:[%s0 + $0x70] sm:$0xff]
    %v37 = vld [vmem:[%s0 + $0x78] sm:$0xff]
    %v38 = vld [vmem:[%s1] sm:$0xff]
    %v39 = vld [vmem:[%s1 + $0x8] sm:$0xff]
    %v40 = vld [vmem:[%s2] sm:$0x1]
    %v42 = vlaneseq
    %v43 = vshrl.u32 %v42, 7
    %v44 = vsub.s32 0, %v43
    %v45 = vrot.slane %v40, %v44
    %vm47 = vcmask 130048
    %v49 = vsel %vm47, %v22, 0
    %v52 = vsel %vm47, %v23, 0
    %v55 = vsel %vm47, %v24, 0
    %v58 = vsel %vm47, %v25, 0
    %v61 = vsel %vm47, %v26, 0
    %v64 = vsel %vm47, %v27, 0
    %v67 = vsel %vm47, %v28, 0
    %v70 = vsel %vm47, %v29, 0
    %v73 = vsel %vm47, %v30, 0
    %v76 = vsel %vm47, %v31, 0
    %v79 = vsel %vm47, %v32, 0
    %v82 = vsel %vm47, %v33, 0
    %v85 = vsel %vm47, %v34, 0
    %v88 = vsel %vm47, %v35, 0
    %v91 = vsel %vm47, %v36, 0
    %v94 = vsel %vm47, %v37, 0
    %96 = vmatprep.subr.mxu0 0.0
    %97 = vmatpush1.msra.mxu0 %v38
    %98 = vmatprep.subr.mxu0 0.0
    %99 = vmatpush1.msra.mxu0 %v39
    %100 = vmatprep.subr.mxu0 0.0
    %101 = vmatpush1.msra.mxu0 0.0
    %102 = vmatprep.subr.mxu0 0.0
    %103 = vmatpush1.msra.mxu0 0.0
    %104 = vmatprep.subr.mxu0 0.0
    %105 = vmatpush1.msra.mxu0 0.0
    %106 = vmatprep.subr.mxu0 0.0
    %107 = vmatpush1.msra.mxu0 0.0
    %108 = vmatprep.subr.mxu0 0.0
    %109 = vmatpush1.msra.mxu0 0.0
    %110 = vmatprep.subr.mxu0 0.0
    %111 = vmatpush1.msra.mxu0 0.0
    %112 = vmatprep.subr.mxu0 0.0
    %113 = vmatpush1.msra.mxu0 0.0
    %114 = vmatprep.subr.mxu0 0.0
    %115 = vmatpush1.msra.mxu0 0.0
    %116 = vmatprep.subr.mxu0 0.0
    %117 = vmatpush1.msra.mxu0 0.0
    %118 = vmatprep.subr.mxu0 0.0
    %119 = vmatpush1.msra.mxu0 0.0
    %120 = vmatprep.subr.mxu0 0.0
    %121 = vmatpush1.msra.mxu0 0.0
    %122 = vmatprep.subr.mxu0 0.0
    %123 = vmatpush1.msra.mxu0 0.0
    %124 = vmatprep.subr.mxu0 0.0
    %125 = vmatpush1.msra.mxu0 0.0
    %126 = vmatprep.subr.mxu0 0.0
    %127 = vmatpush1.msra.mxu0 0.0
    %128 = vmatprep.subr.mxu0 0.0
    %129 = vmatpush1.msra.mxu0 0.0
    %130 = vmatprep.subr.mxu0 0.0
    %131 = vmatpush1.msra.mxu0 0.0
    %132 = vmatprep.subr.mxu0 0.0
    %133 = vmatpush1.msra.mxu0 0.0
    %134 = vmatprep.subr.mxu0 0.0
    %135 = vmatpush1.msra.mxu0 0.0
    %136 = vmatprep.subr.mxu0 0.0
    %137 = vmatpush1.msra.mxu0 0.0
    %138 = vmatprep.subr.mxu0 0.0
    %139 = vmatpush1.msra.mxu0 0.0
    %140 = vmatprep.subr.mxu0 0.0
    %141 = vmatpush1.msra.mxu0 0.0
    %142 = vmatprep.subr.mxu0 0.0
    %143 = vmatpush1.msra.mxu0 0.0
    %144 = vmatprep.subr.mxu0 0.0
    %145 = vmatpush1.msra.mxu0 0.0
    %146 = vmatprep.subr.mxu0 0.0
    %147 = vmatpush1.msra.mxu0 0.0
    %148 = vmatprep.subr.mxu0 0.0
    %149 = vmatpush1.msra.mxu0 0.0
    %150 = vmatprep.subr.mxu0 0.0
    %151 = vmatpush1.msra.mxu0 0.0
    %152 = vmatprep.subr.mxu0 0.0
    %153 = vmatpush1.msra.mxu0 0.0
    %154 = vmatprep.subr.mxu0 0.0
    %155 = vmatpush1.msra.mxu0 0.0
    %156 = vmatprep.subr.mxu0 0.0
    %157 = vmatpush1.msra.mxu0 0.0
    %158 = vmatprep.subr.mxu0 0.0
    %159 = vmatpush1.msra.mxu0 0.0
    %160 = vmatprep.mubr.f32.mxu0 0.0
    %161 = vmatmul.mubr.f32.gmra.mrb[0].mxu0 %v49
    %v162 = vpop.f32.mrb[0].mxu0
    %v163 = vadd.f32 %v45, %v162
    %v164 = vpop.f32.mrb[0].mxu0
    %165 = vmatprep.mubr.f32.mxu0 0.0
    %166 = vmatmul.mubr.f32.gmra.mrb[0].mxu0 %v52
    %v167 = vpop.f32.mrb[0].mxu0
    %v168 = vadd.f32 %v45, %v167
    %v169 = vpop.f32.mrb[0].mxu0
    %170 = vmatprep.mubr.f32.mxu0 0.0
    %171 = vmatmul.mubr.f32.gmra.mrb[0].mxu0 %v55
    %v172 = vpop.f32.mrb[0].mxu0
    %v173 = vadd.f32 %v45, %v172
    %v174 = vpop.f32.mrb[0].mxu0
    %175 = vmatprep.mubr.f32.mxu0 0.0
    %176 = vmatmul.mubr.f32.gmra.mrb[0].mxu0 %v58
    %v177 = vpop.f32.mrb[0].mxu0
    %v178 = vadd.f32 %v45, %v177
    %v179 = vpop.f32.mrb[0].mxu0
    %180 = vmatprep.mubr.f32.mxu0 0.0
    %181 = vmatmul.mubr.f32.gmra.mrb[0].mxu0 %v61
    %v182 = vpop.f32.mrb[0].mxu0
    %v183 = vadd.f32 %v45, %v182
    %v184 = vpop.f32.mrb[0].mxu0
    %185 = vmatprep.mubr.f32.mxu0 0.0
    %186 = vmatmul.mubr.f32.gmra.mrb[0].mxu0 %v64
    %v187 = vpop.f32.mrb[0].mxu0
    %v188 = vadd.f32 %v45, %v187
    %v189 = vpop.f32.mrb[0].mxu0
    %190 = vmatprep.mubr.f32.mxu0 0.0
    %191 = vmatmul.mubr.f32.gmra.mrb[0].mxu0 %v67
    %v192 = vpop.f32.mrb[0].mxu0
    %v193 = vadd.f32 %v45, %v192
    %v194 = vpop.f32.mrb[0].mxu0
    %195 = vmatprep.mubr.f32.mxu0 0.0
    %196 = vmatmul.mubr.f32.gmra.mrb[0].mxu0 %v70
    %v197 = vpop.f32.mrb[0].mxu0
    %v198 = vadd.f32 %v45, %v197
    %v199 = vpop.f32.mrb[0].mxu0
    %200 = vmatprep.mubr.f32.mxu0 0.0
    %201 = vmatmul.mubr.f32.gmra.mrb[0].mxu0 %v73
    %v202 = vpop.f32.mrb[0].mxu0
    %v203 = vadd.f32 %v45, %v202
    %v204 = vpop.f32.mrb[0].mxu0
    %205 = vmatprep.mubr.f32.mxu0 0.0
    %206 = vmatmul.mubr.f32.gmra.mrb[0].mxu0 %v76
    %v207 = vpop.f32.mrb[0].mxu0
    %v208 = vadd.f32 %v45, %v207
    %v209 = vpop.f32.mrb[0].mxu0
    %210 = vmatprep.mubr.f32.mxu0 0.0
    %211 = vmatmul.mubr.f32.gmra.mrb[0].mxu0 %v79
    %v212 = vpop.f32.mrb[0].mxu0
    %v213 = vadd.f32 %v45, %v212
    %v214 = vpop.f32.mrb[0].mxu0
    %215 = vmatprep.mubr.f32.mxu0 0.0
    %216 = vmatmul.mubr.f32.gmra.mrb[0].mxu0 %v82
    %v217 = vpop.f32.mrb[0].mxu0
    %v218 = vadd.f32 %v45, %v217
    %v219 = vpop.f32.mrb[0].mxu0
    %220 = vmatprep.mubr.f32.mxu0 0.0
    %221 = vmatmul.mubr.f32.gmra.mrb[0].mxu0 %v85
    %v222 = vpop.f32.mrb[0].mxu0
    %v223 = vadd.f32 %v45, %v222
    %v224 = vpop.f32.mrb[0].mxu0
    %225 = vmatprep.mubr.f32.mxu0 0.0
    %226 = vmatmul.mubr.f32.gmra.mrb[0].mxu0 %v88
    %v227 = vpop.f32.mrb[0].mxu0
    %v228 = vadd.f32 %v45, %v227
    %v229 = vpop.f32.mrb[0].mxu0
    %230 = vmatprep.mubr.f32.mxu0 0.0
    %231 = vmatmul.mubr.f32.gmra.mrb[0].mxu0 %v91
    %v232 = vpop.f32.mrb[0].mxu0
    %v233 = vadd.f32 %v45, %v232
    %v234 = vpop.f32.mrb[0].mxu0
    %235 = vmatprep.mubr.f32.mxu0 0.0
    %236 = vmatmul.mubr.f32.gmra.mrb[0].mxu0 %v94
    %v237 = vpop.f32.mrb[0].mxu0
    %v238 = vadd.f32 %v45, %v237
    %v239 = vpop.f32.mrb[0].mxu0
    %240 = vdwg.mxu0
    %v241 = vmax.f32 %v163, 0.0
    %v242 = vmax.f32 %v168, 0.0
    %v243 = vmax.f32 %v173, 0.0
    %v244 = vmax.f32 %v178, 0.0
    %v245 = vmax.f32 %v183, 0.0
    %v246 = vmax.f32 %v188, 0.0
    %v247 = vmax.f32 %v193, 0.0
    %v248 = vmax.f32 %v198, 0.0
    %v249 = vmax.f32 %v203, 0.0
    %v250 = vmax.f32 %v208, 0.0
    %v251 = vmax.f32 %v213, 0.0
    %v252 = vmax.f32 %v218, 0.0
    %v253 = vmax.f32 %v223, 0.0
    %v254 = vmax.f32 %v228, 0.0
    %v255 = vmax.f32 %v233, 0.0
    %v256 = vmax.f32 %v238, 0.0
    %v257 = vld [vmem:[%s3] sm:$0x1]
    %s258 = sld [smem:[#allocation2]]
    %v259 = vstv %s258
    %vm260 = vcmask 261120
    %v262 = vsel %vm260, %v257, 0
    %v265 = vsel %vm260, %v241, 0
    %v268 = vsel %vm260, %v242, 0
    %v271 = vsel %vm260, %v243, 0
    %v274 = vsel %vm260, %v244, 0
    %v277 = vsel %vm260, %v245, 0
    %v280 = vsel %vm260, %v246, 0
    %v283 = vsel %vm260, %v247, 0
    %v286 = vsel %vm260, %v248, 0
    %v289 = vsel %vm260, %v249, 0
    %v292 = vsel %vm260, %v250, 0
    %v295 = vsel %vm260, %v251, 0
    %v298 = vsel %vm260, %v252, 0
    %v301 = vsel %vm260, %v253, 0
    %v304 = vsel %vm260, %v254, 0
    %v307 = vsel %vm260, %v255, 0
    %v310 = vsel %vm260, %v256, 0
    %312 = vmatprep.subr.mxu0 0.0
    %313 = vmatpush1.xpose.msra.mxu0 %v265
    %314 = vmatprep.subr.mxu0 0.0
    %315 = vmatpush1.xpose.msra.mxu0 %v268
    %316 = vmatprep.subr.mxu0 0.0
    %317 = vmatpush1.xpose.msra.mxu0 %v271
    %318 = vmatprep.subr.mxu0 0.0
    %319 = vmatpush1.xpose.msra.mxu0 %v274
    %320 = vmatprep.subr.mxu0 0.0
    %321 = vmatpush1.xpose.msra.mxu0 %v277
    %322 = vmatprep.subr.mxu0 0.0
    %323 = vmatpush1.xpose.msra.mxu0 %v280
    %324 = vmatprep.subr.mxu0 0.0
    %325 = vmatpush1.xpose.msra.mxu0 %v283
    %326 = vmatprep.subr.mxu0 0.0
    %327 = vmatpush1.xpose.msra.mxu0 %v286
    %328 = vmatprep.subr.mxu0 0.0
    %329 = vmatpush1.xpose.msra.mxu0 %v289
    %330 = vmatprep.subr.mxu0 0.0
    %331 = vmatpush1.xpose.msra.mxu0 %v292
    %332 = vmatprep.subr.mxu0 0.0
    %333 = vmatpush1.xpose.msra.mxu0 %v295
    %334 = vmatprep.subr.mxu0 0.0
    %335 = vmatpush1.xpose.msra.mxu0 %v298
    %336 = vmatprep.subr.mxu0 0.0
    %337 = vmatpush1.xpose.msra.mxu0 %v301
    %338 = vmatprep.subr.mxu0 0.0
    %339 = vmatpush1.xpose.msra.mxu0 %v304
    %340 = vmatprep.subr.mxu0 0.0
    %341 = vmatpush1.xpose.msra.mxu0 %v307
    %342 = vmatprep.subr.mxu0 0.0
    %343 = vmatpush1.xpose.msra.mxu0 %v310
    %344 = vmatprep.subr.mxu0 0.0
    %345 = vmatpush1.xpose.msra.mxu0 0.0
    %346 = vmatprep.subr.mxu0 0.0
    %347 = vmatpush1.xpose.msra.mxu0 0.0
    %348 = vmatprep.subr.mxu0 0.0
    %349 = vmatpush1.xpose.msra.mxu0 0.0
    %350 = vmatprep.subr.mxu0 0.0
    %351 = vmatpush1.xpose.msra.mxu0 0.0
    %352 = vmatprep.subr.mxu0 0.0
    %353 = vmatpush1.xpose.msra.mxu0 0.0
    %354 = vmatprep.subr.mxu0 0.0
    %355 = vmatpush1.xpose.msra.mxu0 0.0
    %356 = vmatprep.subr.mxu0 0.0
    %357 = vmatpush1.xpose.msra.mxu0 0.0
    %358 = vmatprep.subr.mxu0 0.0
    %359 = vmatpush1.xpose.msra.mxu0 0.0
    %360 = vmatprep.subr.mxu0 0.0
    %361 = vmatpush1.xpose.msra.mxu0 0.0
    %362 = vmatprep.subr.mxu0 0.0
    %363 = vmatpush1.xpose.msra.mxu0 0.0
    %364 = vmatprep.subr.mxu0 0.0
    %365 = vmatpush1.xpose.msra.mxu0 0.0
    %366 = vmatprep.subr.mxu0 0.0
    %367 = vmatpush1.xpose.msra.mxu0 0.0
    %368 = vmatprep.subr.mxu0 0.0
    %369 = vmatpush1.xpose.msra.mxu0 0.0
    %370 = vmatprep.subr.mxu0 0.0
    %371 = vmatpush1.xpose.msra.mxu0 0.0
    %372 = vmatprep.subr.mxu0 0.0
    %373 = vmatpush1.xpose.msra.mxu0 0.0
    %374 = vmatprep.subr.mxu0 0.0
    %375 = vmatpush1.xpose.msra.mxu0 0.0
    %376 = vmatprep.mubr.f32.mxu0 0.0
    %377 = vmatmul.mubr.f32.gmra.mrb[0].mxu0 %v262
    %v378 = vpop.f32.mrb[0].mxu0
    %v379 = vadd.f32 %v259, %v378
    %v380 = vpop.f32.mrb[0].mxu0
    %381 = vdwg.mxu0
    %v382 = vxor.u32 %v379, 2147483648
    %v383 = vmul.f32 %v382, 1.442695
    %v384 = vpow.pop %v383
    %v385 = vadd.f32 %v384, 1.0
    %v386 = vrcp.pop %v385
    %v387 = vmul.f32 1.0, %v386
    %388 = vst [vmem:[#allocation3] sm:$0x1] %v387
    // Predicated region
    $region22: #{tpu_custom_call.1} parent=1 // pred_check
      _
    $region23: #{tpu_custom_call.1} parent=1 // pred_check_branch
      %390 = sbr.rel (0) target = $region25
    $region24: #{tpu_custom_call.1} parent=1 // pred_region
      %s392 = ssub.s32 16, 16
      %393 = vsyncadd [#allocation4], %s392
      %s395 = sshll.u32 [#allocation3], 4
      %s396 = int_to_ptr.vmem [resolvable:$true] %s395
      %398 = dma.vmem_to_hbm [thread:$0]  %s396, 16, %s5, [#allocation4]
    $region25: #{tpu_custom_call.1} parent=1 // pred_fallthru
      _
    // Predicated region
    $region26: #{tpu_custom_call.1} parent=1 // pred_check
      _
    $region27: #{tpu_custom_call.1} parent=1 // pred_check_branch
      %400 = sbr.rel (0) target = $region29
    $region28: #{tpu_custom_call.1} parent=1 // pred_region
      %401 = dma.done [#allocation4], 16
    $region29: #{tpu_custom_call.1} parent=1 // pred_fallthru
      _
    %402 = vsyncpa [#allocation4], 1

</llo_original>
